<compile_context>
chip_gen: v7x
topology: tpu7x:2x2x1
jax: 0.10.0
libtpu: 0.0.40
codegen_flags: <defaults>
</compile_context>

<pallas_src>
import functools

import jax
import jax.numpy as jnp
from jax.experimental import pallas as pl
from jax.experimental.pallas import tpu as pltpu


_LANE = 128
# Per-input-block byte budget: 4 MiB blocks, double-buffered in + out = 16 MiB
# resident, covered by the explicit 32 MiB VMEM limit below (fits v5e's 128 MiB
# physical, v6e's 128 MiB, and v7x's 64 MiB physical VMEM).
_BLOCK_BYTE_BUDGET = 4 * 1024 * 1024
_VMEM_LIMIT_BYTES = 32 * 1024 * 1024
_FLAT_ROWS = 4096              # 4096 * 128 * 4B = 2 MiB per flat-argmax chunk
_INT_SENTINEL = 2**31 - 1


def _pick_hw_tile(c, hw, itemsize):
    """Lane-dense spatial tile for channel ops: multiple of 128 within budget."""
    max_lanes = max(_BLOCK_BYTE_BUDGET // max(c * itemsize, 1), _LANE)
    if hw <= max_lanes:
        # TODO(synk): hw < 128 here produces masked (vst.msk) partial stores.
        return hw                        # whole HW in one block (full-dim exemption)
    return (max_lanes // _LANE) * _LANE  # multiple of 128, >= 128


# ----------------------------- kernels ------------------------------------ #

def _eltwise_kernel(x_ref, o_ref, *, fn):
    # Pure elementwise on VPU/EUP; block shape is whatever the wrapper chose.
    o_ref[...] = fn(x_ref[...]).astype(o_ref.dtype)


def _channel_softmax_kernel(x_ref, o_ref, *, log):
    # softmax / logsoftmax over the channel axis (axis=1 of the (1,C,TILE) block).
    x = x_ref[...].astype(jnp.float32)
    m = jnp.max(x, axis=1, keepdims=True)
    z = x - m
    e = jnp.exp(z)
    s = jnp.sum(e, axis=1, keepdims=True)
    if log:
        out = z - jnp.log(s)
    else:
        out = e / s          # exact: the kernel is HBM-bound, extra VPU work is free
    o_ref[...] = out.astype(o_ref.dtype)


def _channel_argmax_kernel(x_ref, o_ref):
    # argmax over the channel axis; first-max-index tie break (matches jnp/torch).
    # TODO(synk): columns containing NaN get the out-of-range sentinel C instead
    # of the NaN position that torch.argmax would return.
    x = x_ref[...]                                            # (1, C, TILE_HW)
    c = x.shape[1]
    m = jnp.max(x, axis=1, keepdims=True)
    idx = jax.lax.broadcasted_iota(jnp.int32, x.shape, 1)
    masked = jnp.where(x == m, idx, jnp.int32(c))             # sentinel > any idx
    o_ref[...] = jnp.min(masked, axis=1, keepdims=True).astype(jnp.int32)


def _flat_argmax_kernel(x_ref, o_ref, vmax_ref, vidx_ref, *, total):
    # Tiled running argmax over (rows, 128) chunks.  Running state is a full
    # (8, 128) vreg of (max, flat_index) pairs updated with pure VPU ops; the
    # only XLU (cross-lane) reduction happens once, on the last grid step.
    # TODO(synk): indices and int inputs go through int32/f32 (torch uses int64).
    j = pl.program_id(0)

    @pl.when(j == 0)
    def _():
        vmax_ref[...] = jnp.full_like(vmax_ref, -jnp.inf)
        vidx_ref[...] = jnp.zeros_like(vidx_ref)

    x = x_ref[...]
    if x.dtype != jnp.float32:
        x = x.astype(jnp.float32)
    rows, lanes = x.shape
    ridx = jax.lax.broadcasted_iota(jnp.int32, x.shape, 0)
    cidx = jax.lax.broadcasted_iota(jnp.int32, x.shape, 1)
    flat = (j * rows + ridx) * lanes + cidx
    # Mask padding / ragged-edge garbage against the true element count.
    x = jnp.where(flat < total, x, -jnp.inf)

    # (rows,128) -> (8,128) via vreg-wise max/compare-select only (no XLU).
    x3 = x.reshape(rows // 8, 8, lanes)
    f3 = flat.reshape(rows // 8, 8, lanes)
    m8 = jnp.max(x3, axis=0)                                  # (8, 128)
    i8 = jnp.min(jnp.where(x3 == m8[None], f3, jnp.int32(_INT_SENTINEL)), axis=0)

    # Strict > keeps the earliest chunk's index (chunks scan in index order).
    better = m8 > vmax_ref[...]
    vidx_ref[...] = jnp.where(better, i8, vidx_ref[...])
    vmax_ref[...] = jnp.where(better, m8, vmax_ref[...])

    @pl.when(j == pl.num_programs(0) - 1)
    def _():
        vmax = vmax_ref[...]
        vidx = vidx_ref[...]
        gm = jnp.max(jnp.max(vmax, axis=1, keepdims=True), axis=0, keepdims=True)
        cand = jnp.where(vmax == gm, vidx, jnp.int32(_INT_SENTINEL))
        o_ref[...] = jnp.min(jnp.min(cand, axis=1, keepdims=True),
                             axis=0, keepdims=True)


# ----------------------------- wrappers ------------------------------------ #

def _apply_eltwise(x, fn):
    """Elementwise activation on a C-independent lane-dense (R, 128) layout."""
    total = int(x.size)
    itemsize = jnp.dtype(x.dtype).itemsize
    budget_rows = max((_BLOCK_BYTE_BUDGET // (_LANE * itemsize)) // 8 * 8, 8)

    rows = 0
    if total % _LANE == 0:
        r_full = total // _LANE
        if r_full % 8 == 0:
            rows = min(r_full, budget_rows)
        elif r_full > budget_rows:
            rows = budget_rows            # ragged last block is masked by Pallas
    if rows:
        r_full = total // _LANE
        xr = x.reshape(r_full, _LANE)
        out = pl.pallas_call(
            functools.partial(_eltwise_kernel, fn=fn),
            out_shape=jax.ShapeDtypeStruct((r_full, _LANE), x.dtype),
            grid=(pl.cdiv(r_full, rows),),
            in_specs=[pl.BlockSpec((rows, _LANE), lambda i: (i, 0))],
            out_specs=pl.BlockSpec((rows, _LANE), lambda i: (i, 0)),
            compiler_params=pltpu.CompilerParams(
                dimension_semantics=("parallel",),
                vmem_limit_bytes=_VMEM_LIMIT_BYTES),
        )(xr)
        return out.reshape(x.shape)

    # Fallback for sizes not divisible by 128: one whole-array block.
    # TODO(synk): very large tensors with size % 128 != 0 could exceed VMEM here.
    return pl.pallas_call(
        functools.partial(_eltwise_kernel, fn=fn),
        out_shape=jax.ShapeDtypeStruct(x.shape, x.dtype),
        compiler_params=pltpu.CompilerParams(
            vmem_limit_bytes=_VMEM_LIMIT_BYTES),
    )(x)


def _apply_channel_softmax(x, *, log):
    n, c, h, w = x.shape
    hw = h * w
    tile = _pick_hw_tile(c, hw, jnp.dtype(x.dtype).itemsize)
    xr = x.reshape(n, c, hw)
    out = pl.pallas_call(
        functools.partial(_channel_softmax_kernel, log=log),
        out_shape=jax.ShapeDtypeStruct((n, c, hw), x.dtype),
        grid=(n, pl.cdiv(hw, tile)),
        in_specs=[pl.BlockSpec((1, c, tile), lambda i, j: (i, 0, j))],
        out_specs=pl.BlockSpec((1, c, tile), lambda i, j: (i, 0, j)),
        compiler_params=pltpu.CompilerParams(
            dimension_semantics=("parallel", "parallel"),
            vmem_limit_bytes=_VMEM_LIMIT_BYTES),
    )(xr)
    return out.reshape(n, c, h, w)


def _apply_channel_argmax(x):
    n, c, h, w = x.shape
    hw = h * w
    tile = _pick_hw_tile(c, hw, jnp.dtype(x.dtype).itemsize)
    xr = x.reshape(n, c, hw)
    out = pl.pallas_call(
        _channel_argmax_kernel,
        out_shape=jax.ShapeDtypeStruct((n, 1, hw), jnp.int32),
        grid=(n, pl.cdiv(hw, tile)),
        in_specs=[pl.BlockSpec((1, c, tile), lambda i, j: (i, 0, j))],
        out_specs=pl.BlockSpec((1, 1, tile), lambda i, j: (i, 0, j)),
        compiler_params=pltpu.CompilerParams(
            dimension_semantics=("parallel", "parallel"),
            vmem_limit_bytes=_VMEM_LIMIT_BYTES),
    )(xr)
    # TODO(synk): torch.argmax returns int64; JAX default-int config gives int32.
    return out.reshape(n, h, w)


def _apply_flat_argmax(x):
    total = int(x.size)
    xf = x.reshape(-1)
    if total % _LANE == 0 and (total // _LANE) % 8 == 0:
        r_full = total // _LANE
    elif total % _LANE == 0 and total // _LANE > _FLAT_ROWS:
        r_full = total // _LANE          # ragged tail masked in-kernel
    else:
        # TODO(synk): rare non-(8*128)-divisible sizes pay one HBM copy to pad.
        padded = -(-total // (8 * _LANE)) * (8 * _LANE)
        xf = jnp.concatenate([xf, jnp.zeros((padded - total,), dtype=x.dtype)])
        r_full = padded // _LANE
    rows = min(r_full, _FLAT_ROWS)       # multiple of 8 by construction
    xr = xf.reshape(r_full, _LANE)

    # TODO(synk): single "arbitrary" axis is serial on one TC; a two-stage
    # parallel per-chunk reduce would use both v7x TensorCores.
    out = pl.pallas_call(
        functools.partial(_flat_argmax_kernel, total=total),
        out_shape=jax.ShapeDtypeStruct((1, 1), jnp.int32),
        grid=(pl.cdiv(r_full, rows),),
        in_specs=[pl.BlockSpec((rows, _LANE), lambda j: (j, 0))],
        out_specs=pl.BlockSpec((1, 1), lambda j: (0, 0)),
        scratch_shapes=[pltpu.VMEM((8, _LANE), jnp.float32),
                        pltpu.VMEM((8, _LANE), jnp.int32)],
        compiler_params=pltpu.CompilerParams(
            dimension_semantics=("arbitrary",),
            vmem_limit_bytes=_VMEM_LIMIT_BYTES),
    )(xr)
    return out.reshape(())


def _sigmoid_f32(v):
    v = v.astype(jnp.float32)
    return 1.0 / (1.0 + jnp.exp(-v))


def _tanh_f32(v):
    return jnp.tanh(v.astype(jnp.float32))


class Activation:
    """JAX/Pallas mirror of dual_unet.models.base.modules.Activation."""

    def __init__(self, name, **params):
        if name is None or name == 'identity':
            # No kernel launch: identity would cost 2x tensor bytes of HBM DMA.
            self._fn = lambda x: x
        elif name == 'sigmoid':
            self._fn = lambda x: _apply_eltwise(x, _sigmoid_f32)
        elif name == 'tanh':
            self._fn = lambda x: _apply_eltwise(x, _tanh_f32)
        elif name == 'softmax2d':
            self._fn = lambda x: _apply_channel_softmax(x, log=False)
        elif name == 'softmax':
            dim = params.get('dim', 1)   # torch's implicit dim for 4D is 1
            if dim not in (1, -3):
                raise NotImplementedError("softmax only supported over channel dim for NCHW")
            self._fn = lambda x: _apply_channel_softmax(x, log=False)
        elif name == 'logsoftmax':
            dim = params.get('dim', 1)
            if dim not in (1, -3):
                raise NotImplementedError("logsoftmax only supported over channel dim for NCHW")
            self._fn = lambda x: _apply_channel_softmax(x, log=True)
        elif name == 'argmax':
            dim = params.get('dim', None)
            if dim is None:
                self._fn = _apply_flat_argmax
            elif dim in (1, -3):
                self._fn = _apply_channel_argmax
            else:
                raise NotImplementedError("argmax only supported for dim=None or channel dim")
        elif name == 'argmax2d':
            self._fn = _apply_channel_argmax
        elif callable(name):
            # TODO(synk): arbitrary user callables cannot be generically lowered to Pallas.
            raise NotImplementedError("custom callable activations are not Pallas-ized")
        else:
            raise ValueError(f"Unsupported activation: {name}")

    def __call__(self, x):
        return self._fn(x)


# ------------------------------- demo -------------------------------------- #

if __name__ == "__main__":
    key = jax.random.PRNGKey(0)
    x = jax.random.normal(key, (2, 4, 16, 16), dtype=jnp.float32)  # NCHW

    # identity (no kernel)
    y_id = jax.block_until_ready(Activation('identity')(x))
    assert jnp.allclose(y_id, x)

    # sigmoid
    y_sig = jax.block_until_ready(Activation('sigmoid')(x))
    assert jnp.allclose(y_sig, jax.nn.sigmoid(x), atol=1e-5)

    # tanh
    y_tanh = jax.block_until_ready(Activation('tanh')(x))
    assert jnp.allclose(y_tanh, jnp.tanh(x), atol=1e-5)

    # softmax2d (channel softmax, exact division)
    y_sm2d = jax.block_until_ready(Activation('softmax2d')(x))
    assert jnp.allclose(y_sm2d, jax.nn.softmax(x, axis=1), atol=1e-5)

    # softmax / logsoftmax over dim=1
    y_sm = jax.block_until_ready(Activation('softmax', dim=1)(x))
    assert jnp.allclose(y_sm, jax.nn.softmax(x, axis=1), atol=1e-5)
    y_lsm = jax.block_until_ready(Activation('logsoftmax', dim=1)(x))
    assert jnp.allclose(y_lsm, jax.nn.log_softmax(x, axis=1), atol=1e-5)

    # argmax2d (channel argmax) and flat argmax (tiled running reduction)
    y_am2d = jax.block_until_ready(Activation('argmax2d')(x))
    assert y_am2d.shape == (2, 16, 16)
    assert jnp.array_equal(y_am2d, jnp.argmax(x, axis=1).astype(jnp.int32))
    y_am = jax.block_until_ready(Activation('argmax')(x))
    assert y_am.shape == ()
    assert int(y_am) == int(jnp.argmax(x))

    print("KERNEL_OK")
</pallas_src>

<mosaic_0001>
module attributes {stable_mosaic.version = 11 : i64} {
  func.func @_eltwise_kernel(%arg0: i32, %arg1: memref<16x128xf32, #tpu.memory_space<vmem>>, %arg2: memref<16x128xf32, #tpu.memory_space<vmem>>) attributes {dimension_semantics = [#tpu.dimension_semantics<parallel>], iteration_bounds = array<i64: 1>, scalar_prefetch = 0 : i64, scratch_operands = 0 : i64, tpu.core_type = #tpu.core_type<tc>, window_params = [{transform_indices = @transform_0, window_bounds = array<i64: 16, 128>}, {transform_indices = @transform_1, window_bounds = array<i64: 16, 128>}]} {
    %c0 = arith.constant 0 : index
    %c0_0 = arith.constant 0 : index
    %0 = vector.load %arg1[%c0, %c0_0] : memref<16x128xf32, #tpu.memory_space<vmem>>, vector<16x128xf32>
    %cst = arith.constant 0.000000e+00 : f32
    %1 = vector.broadcast %cst : f32 to vector<16x128xf32>
    %2 = arith.subf %1, %0 : vector<16x128xf32>
    %3 = math.exp %2 : vector<16x128xf32>
    %cst_1 = arith.constant 1.000000e+00 : f32
    %4 = vector.broadcast %cst_1 : f32 to vector<16x128xf32>
    %5 = arith.addf %4, %3 : vector<16x128xf32>
    %cst_2 = arith.constant 1.000000e+00 : f32
    %6 = vector.broadcast %cst_2 : f32 to vector<16x128xf32>
    %7 = arith.divf %6, %5 : vector<16x128xf32>
    %c0_3 = arith.constant 0 : index
    %c0_4 = arith.constant 0 : index
    %8 = vector.load %arg2[%c0_3, %c0_4] : memref<16x128xf32, #tpu.memory_space<vmem>>, vector<16x128xf32>
    tpu.vector_store %arg2[%c0_3, %c0_4], %7 {strides = array<i32>} : memref<16x128xf32, #tpu.memory_space<vmem>>, vector<16x128xf32>,
    return
  }
  func.func @transform_0(%arg0: i32) -> (i32, i32) {
    %c0_i32 = arith.constant 0 : i32
    %c0_i32_0 = arith.constant 0 : i32
    return %arg0, %c0_i32 : i32, i32
  }
  func.func @transform_1(%arg0: i32) -> (i32, i32) {
    %c0_i32 = arith.constant 0 : i32
    %c0_i32_0 = arith.constant 0 : i32
    return %arg0, %c0_i32 : i32, i32
  }
}

</mosaic_0001>

<llo_original>
// kernel: tpu_custom_call.1
$region0: #{tpu_custom_call.1}
  #allocation0 [shape = 'u32[]', space=smem, size = 0x4, offset = 0x4, fixed_abs, tag = 'smem constant byte address 0x4 - core index']
  #allocation1 [shape = 'u32[144,128]{1,0:T(1,128)}', space=vmem, size = 0x12000, scoped, tag = 'internal scratch']
  %s0 = inlined_call_operand.hbm [shape: f32[16,128], index: 0, kind: input, shape index: {}]
  %s1 = inlined_call_operand.hbm [shape: f32[16,128], index: 1, kind: output, shape index: {}]
  %s2 = sld [smem:[#allocation0]]
  $region18: #{tpu_custom_call.1} parent=0
    _
  %s4 = ssub.s32 1, %s2
  %s5 = scalar_select 0, %s4, %s2
  $region1: #{tpu_custom_call.1} parent=0
    #allocation2 [shape = 'u8[8192]{0}', space=vmem, size = 0x2000, scoped, tag = 'input window, operand 0, single buffered']
    #allocation3 [shape = 's32[1]{0}', space=sflag, size = 0x4, scoped, tag = 'scoped memory for tpu_custom_call.1']
    #allocation4 [shape = 's32[1]{0}', space=sflag, size = 0x4, scoped, tag = 'scoped memory for tpu_custom_call.1']
    #allocation5 [shape = 'u8[8192]{0}', space=vmem, size = 0x2000, scoped, tag = 'output window, operand 0, single buffered']
    %6 = vsyncpa [#allocation3], 0
    %7 = vsyncpa [#allocation4], 0
    // Predicated region
    $region2: #{tpu_custom_call.1} parent=1 // pred_check
      _
    $region3: #{tpu_custom_call.1} parent=1 // pred_check_branch
      %9 = sbr.rel (0) target = $region5
    $region4: #{tpu_custom_call.1} parent=1 // pred_region
      %s11 = ssub.s32 256, 256
      %12 = vsyncadd [#allocation3], %s11
      %s13 = sshll.u32 [#allocation2], 4
      %s14 = int_to_ptr.vmem [resolvable:$true] %s13
      %19 = dma.hbm_to_vmem [thread:$0]  %s0, 256, %s14, [#allocation3], 128, 128, 8
    $region5: #{tpu_custom_call.1} parent=1 // pred_fallthru
      _
    // Predicated region
    $region6: #{tpu_custom_call.1} parent=1 // pred_check
      _
    $region7: #{tpu_custom_call.1} parent=1 // pred_check_branch
      %21 = sbr.rel (0) target = $region9
    $region8: #{tpu_custom_call.1} parent=1 // pred_region
      %22 = dma.done [#allocation3], 256
    $region9: #{tpu_custom_call.1} parent=1 // pred_fallthru
      _
    %v23 = vld [vmem:[#allocation2] sm:$0xff]
    %v24 = vld [vmem:[#allocation2 + $0x8] sm:$0xff]
    %v25 = vsub.f32 0.0, %v23
    %v26 = vsub.f32 0.0, %v24
    %v27 = vmul.f32 %v25, 1.442695
    %v28 = vpow.pop %v27
    %v29 = vmul.f32 %v26, 1.442695
    %v30 = vpow.pop %v29
    %v31 = vadd.f32 %v28, 1.0
    %v32 = vadd.f32 %v30, 1.0
    %v33 = vrcp.pop %v31
    %v34 = vmul.f32 1.0, %v33
    %v35 = vrcp.pop %v32
    %v36 = vmul.f32 1.0, %v35
    %37 = vst [vmem:[#allocation5] sm:$0xff] %v34
    %38 = vst [vmem:[#allocation5 + $0x8] sm:$0xff] %v36
    // Predicated region
    $region10: #{tpu_custom_call.1} parent=1 // pred_check
      _
    $region11: #{tpu_custom_call.1} parent=1 // pred_check_branch
      %40 = sbr.rel (0) target = $region13
    $region12: #{tpu_custom_call.1} parent=1 // pred_region
      %s42 = ssub.s32 256, 256
      %43 = vsyncadd [#allocation4], %s42
      %s44 = sshll.u32 [#allocation5], 4
      %s45 = int_to_ptr.vmem [resolvable:$true] %s44
      %50 = dma.vmem_to_hbm [thread:$0]  %s45, 256, %s1, [#allocation4], 128, 128, 8
    $region13: #{tpu_custom_call.1} parent=1 // pred_fallthru
      _
    // Predicated region
    $region14: #{tpu_custom_call.1} parent=1 // pred_check
      _
    $region15: #{tpu_custom_call.1} parent=1 // pred_check_branch
      %52 = sbr.rel (0) target = $region17
    $region16: #{tpu_custom_call.1} parent=1 // pred_region
      %53 = dma.done [#allocation4], 256
    $region17: #{tpu_custom_call.1} parent=1 // pred_fallthru
      _
    %54 = vsyncpa [#allocation3], 1
    %55 = vsyncpa [#allocation4], 1

</llo_original>
